<compile_context>
chip_gen: v5e
topology: v5e:2x2
jax: 0.10.0
libtpu: 0.0.40
codegen_flags: <defaults>
</compile_context>

<pallas_src>
import functools

import jax
import jax.numpy as jnp
from jax.experimental import pallas as pl
from jax.experimental.pallas import tpu as pltpu


# ---------------------------------------------------------------------------
# Fused Pallas kernel: full causal-conv stack for one batch element
# ---------------------------------------------------------------------------
def _fused_cnn_kernel(x_ref, *refs, T, Ks, CP, slope, mxu_dtype):
    # x_ref : (1, T, CP)                input, channels zero-padded to CP lanes
    # refs  : w_0..w_{L-1}  each (K_i*CP, CP)   im2col-reshaped, zero-padded weights
    #         b_0..b_{L-1}  each (1, CP)        zero-padded biases (f32)
    #         o_ref         (1, T, CP)          output (last layer = [mean|logvar|pad])
    #         hp_ref        (Kmax-1+T, CP) f32  VMEM activation scratch
    L = len(Ks)
    w_refs = refs[:L]
    b_refs = refs[L:2 * L]
    o_ref = refs[2 * L]
    hp_ref = refs[2 * L + 1]

    P = max(Ks) - 1  # causal zero-padding rows kept at the top of the scratch

    if P > 0:
        hp_ref[0:P, :] = jnp.zeros((P, CP), jnp.float32)
    hp_ref[P:P + T, :] = x_ref[0]

    for li in range(L):
        K = Ks[li]
        base = P - (K - 1)
        # im2col: K statically-shifted (T, CP) slices -> one (T, K*CP) tile.
        cols = [hp_ref[base + j:base + j + T, :] for j in range(K)]
        x2 = cols[0] if K == 1 else jnp.concatenate(cols, axis=-1)
        acc = jnp.dot(x2.astype(mxu_dtype), w_refs[li][...],
                      preferred_element_type=jnp.float32)     # (T, CP) f32
        acc = acc + b_refs[li][...]                            # bias broadcast
        if li < L - 1:
            acc = jnp.where(acc > 0, acc, slope * acc)         # LeakyReLU(0.1)
            hp_ref[P:P + T, :] = acc                           # stays in VMEM
        else:
            o_ref[0] = acc.astype(o_ref.dtype)


# ---------------------------------------------------------------------------
# Wrapper: weight/bias padding + pallas_call
# ---------------------------------------------------------------------------
def _round_up(n, m):
    return ((n + m - 1) // m) * m


def _pad_weight(w_kio, CP, dtype):
    # (K, C_in, C_out) -> zero-padded (K, CP, CP) -> im2col layout (K*CP, CP)
    K, ci, co = w_kio.shape
    w = jnp.zeros((K, CP, CP), dtype).at[:, :ci, :co].set(w_kio.astype(dtype))
    return w.reshape(K * CP, CP)


def _pad_bias(b, CP):
    return jnp.zeros((1, CP), jnp.float32).at[0, :b.shape[0]].set(
        b.astype(jnp.float32))


def cnn_encoder_forward(x_bct, params, k=1, compute_dtype=jnp.float32):
    """x_bct: (B, dim_x, T) as in PyTorch. Returns (mean, logvar), each
    (B, dim_z, T, k). compute_dtype is the dtype fed to the MXU
    (jnp.bfloat16 recommended on v6e/v7x); accumulation is always float32."""
    B, dim_x, T = x_bct.shape
    dim_z = params["mean_w"].shape[-1]

    # Fuse mean + logvar convs into a single conv with C_out = 2*dim_z.
    w_ml = jnp.concatenate([params["mean_w"], params["logvar_w"]], axis=-1)
    b_ml = jnp.concatenate([params["mean_b"], params["logvar_b"]])
    ws = [w for (w, _) in params["initial"]] + [w_ml]
    bs = [b for (_, b) in params["initial"]] + [b_ml]
    Ks = tuple(int(w.shape[0]) for w in ws)
    Kmax = max(Ks)

    max_ch = max([dim_x] + [int(w.shape[2]) for w in ws])
    CP = _round_up(max_ch, 128)  # lane-aligned channel width

    # Time-major, channel-padded input (one cheap transpose+pad of raw x only;
    # no per-layer activation pads in HBM).
    x_btc = jnp.transpose(x_bct, (0, 2, 1)).astype(jnp.float32)
    x_pad = jnp.zeros((B, T, CP), jnp.float32).at[:, :, :dim_x].set(x_btc)

    wps = [_pad_weight(w, CP, compute_dtype) for w in ws]
    bps = [_pad_bias(b, CP) for b in bs]

    kernel = functools.partial(_fused_cnn_kernel, T=T, Ks=Ks, CP=CP,
                               slope=0.1, mxu_dtype=compute_dtype)
    out = pl.pallas_call(
        kernel,
        out_shape=jax.ShapeDtypeStruct((B, T, CP), jnp.float32),
        grid_spec=pltpu.PrefetchScalarGridSpec(
            num_scalar_prefetch=0,
            grid=(B,),
            in_specs=(
                [pl.BlockSpec((1, T, CP), lambda b: (b, 0, 0))]
                + [pl.BlockSpec((K * CP, CP), lambda b: (0, 0)) for K in Ks]
                + [pl.BlockSpec((1, CP), lambda b: (0, 0)) for _ in Ks]
            ),
            out_specs=pl.BlockSpec((1, T, CP), lambda b: (b, 0, 0)),
            scratch_shapes=[pltpu.VMEM((Kmax - 1 + T, CP), jnp.float32)],
        ),
        compiler_params=pltpu.CompilerParams(
            dimension_semantics=("parallel",)),
    )(x_pad, *wps, *bps)
    # TODO(synk): for large-T deployments, tile T with a Kmax-1 halo in the
    # BlockSpecs (tiles >= 512 on the time axis) and size VMEM against v7x's
    # 64 MiB / 2 TCs instead of one full-T block per batch.

    head = jnp.transpose(out[:, :, :2 * dim_z], (0, 2, 1))   # (B, 2*dim_z, T)
    mean = jnp.broadcast_to(head[:, :dim_z, :, None], (B, dim_z, T, k))
    logvar = jnp.broadcast_to(head[:, dim_z:, :, None], (B, dim_z, T, k))
    return mean, logvar


# ---------------------------------------------------------------------------
# Parameter construction (deterministic, synthetic)
# ---------------------------------------------------------------------------
def init_cnn_encoder_params(key, dim_x, dim_z, kernels, n_channels, init_scale):
    params = {"initial": []}
    in_ch = dim_x
    keys = jax.random.split(key, 2 * (len(kernels) - 1) + 4)
    ki = 0
    for i in range(len(kernels) - 1):
        K, out_ch = kernels[i], n_channels[i]
        scale = 1.0 / jnp.sqrt(in_ch * K)
        w = jax.random.uniform(keys[ki], (K, in_ch, out_ch), jnp.float32,
                               -scale, scale); ki += 1
        b = jax.random.uniform(keys[ki], (out_ch,), jnp.float32,
                               -scale, scale); ki += 1
        params["initial"].append((w, b))
        in_ch = out_ch
    Kf = kernels[-1]
    scale = 1.0 / jnp.sqrt(in_ch * Kf)
    params["mean_w"] = jax.random.uniform(keys[ki], (Kf, in_ch, dim_z),
                                          jnp.float32, -scale, scale); ki += 1
    params["mean_b"] = jax.random.uniform(keys[ki], (dim_z,), jnp.float32,
                                          -scale, scale); ki += 1
    params["logvar_w"] = jax.random.uniform(keys[ki], (Kf, in_ch, dim_z),
                                            jnp.float32, -scale, scale); ki += 1
    # torch: logvar_conv.bias += 2 * log(init_scale)
    params["logvar_b"] = (jax.random.uniform(keys[ki], (dim_z,), jnp.float32,
                                             -scale, scale)
                          + 2.0 * jnp.log(jnp.float32(init_scale)))
    return params
    # TODO(synk): only the causal / zero-pad / leaky_relu / constant_var=False
    # configuration branch of the PyTorch module is implemented here.


# ---------------------------------------------------------------------------
# Pure-JAX reference (lax.conv) for correctness check
# ---------------------------------------------------------------------------
def _ref_conv(h_bct, w_kio, bias, slope=None):
    K = w_kio.shape[0]
    hp = jnp.pad(h_bct, ((0, 0), (0, 0), (K - 1, 0)))
    w_oik = jnp.transpose(w_kio, (2, 1, 0))                # (O, I, K)
    y = jax.lax.conv_general_dilated(
        hp, w_oik, window_strides=(1,), padding="VALID",
        dimension_numbers=("NCH", "OIH", "NCH"))
    y = y + bias[None, :, None]
    if slope is not None:
        y = jnp.where(y > 0, y, slope * y)
    return y


def cnn_encoder_reference(x_bct, params, k=1):
    h = x_bct
    for (w, b) in params["initial"]:
        h = _ref_conv(h, w, b, slope=0.1)
    mean = _ref_conv(h, params["mean_w"], params["mean_b"])
    logvar = _ref_conv(h, params["logvar_w"], params["logvar_b"])
    mean = jnp.repeat(mean[..., None], k, axis=-1)
    logvar = jnp.repeat(logvar[..., None], k, axis=-1)
    return mean, logvar


if __name__ == "__main__":
    B, dim_x, dim_z, T, k_particles = 2, 4, 3, 16, 2
    kernel_sizes = [5, 3, 3]       # (len-1) initial convs + final conv
    n_channels = [8, 16]
    init_scale = 0.1

    key = jax.random.PRNGKey(0)
    key_p, key_x = jax.random.split(key)
    params = init_cnn_encoder_params(key_p, dim_x, dim_z, kernel_sizes,
                                     n_channels, init_scale)
    x = jax.random.normal(key_x, (B, dim_x, T), jnp.float32)

    # f32 path (tight check vs. lax.conv reference)
    mean, logvar = cnn_encoder_forward(x, params, k=k_particles)
    jax.block_until_ready((mean, logvar))

    mean_ref, logvar_ref = cnn_encoder_reference(x, params, k=k_particles)
    assert mean.shape == (B, dim_z, T, k_particles)
    assert logvar.shape == (B, dim_z, T, k_particles)
    assert jnp.allclose(mean, mean_ref, atol=1e-4, rtol=1e-4)
    assert jnp.allclose(logvar, logvar_ref, atol=1e-4, rtol=1e-4)

    # bf16-fed MXU path (recommended on v6e/v7x); f32 accumulation, loose check.
    mean16, logvar16 = cnn_encoder_forward(x, params, k=k_particles,
                                           compute_dtype=jnp.bfloat16)
    jax.block_until_ready((mean16, logvar16))
    assert jnp.allclose(mean16, mean_ref, atol=2e-1, rtol=2e-1)
    assert jnp.allclose(logvar16, logvar_ref, atol=2e-1, rtol=2e-1)

    print("KERNEL_OK")
</pallas_src>

<mosaic_0001>
module attributes {stable_mosaic.version = 11 : i64} {
  func.func @_fused_cnn_kernel(%arg0: i32, %arg1: memref<1x16x128xf32, #tpu.memory_space<vmem>>, %arg2: memref<640x128xf32, #tpu.memory_space<vmem>>, %arg3: memref<384x128xf32, #tpu.memory_space<vmem>>, %arg4: memref<384x128xf32, #tpu.memory_space<vmem>>, %arg5: memref<1x128xf32, #tpu.memory_space<vmem>>, %arg6: memref<1x128xf32, #tpu.memory_space<vmem>>, %arg7: memref<1x128xf32, #tpu.memory_space<vmem>>, %arg8: memref<1x16x128xf32, #tpu.memory_space<vmem>>, %arg9: memref<20x128xf32, #tpu.memory_space<vmem>>) attributes {dimension_semantics = [#tpu.dimension_semantics<parallel>], iteration_bounds = array<i64: 2>, scalar_prefetch = 0 : i64, scratch_operands = 1 : i64, tpu.core_type = #tpu.core_type<tc>, window_params = [{transform_indices = @transform_0, window_bounds = array<i64: 1, 16, 128>}, {pipeline_mode = #tpu.pipeline_mode<synchronous>, transform_indices = @transform_1, window_bounds = array<i64: 640, 128>}, {pipeline_mode = #tpu.pipeline_mode<synchronous>, transform_indices = @transform_2, window_bounds = array<i64: 384, 128>}, {pipeline_mode = #tpu.pipeline_mode<synchronous>, transform_indices = @transform_3, window_bounds = array<i64: 384, 128>}, {pipeline_mode = #tpu.pipeline_mode<synchronous>, transform_indices = @transform_4, window_bounds = array<i64: 1, 128>}, {pipeline_mode = #tpu.pipeline_mode<synchronous>, transform_indices = @transform_5, window_bounds = array<i64: 1, 128>}, {pipeline_mode = #tpu.pipeline_mode<synchronous>, transform_indices = @transform_6, window_bounds = array<i64: 1, 128>}, {transform_indices = @transform_7, window_bounds = array<i64: 1, 16, 128>}]} {
    %cst = arith.constant 0.000000e+00 : f32
    %0 = vector.broadcast %cst : f32 to vector<4x128xf32>
    %c0 = arith.constant 0 : index
    %c0_0 = arith.constant 0 : index
    %1 = vector.load %arg9[%c0, %c0_0] : memref<20x128xf32, #tpu.memory_space<vmem>>, vector<4x128xf32>
    tpu.vector_store %arg9[%c0, %c0_0], %0 {strides = array<i32>} : memref<20x128xf32, #tpu.memory_space<vmem>>, vector<4x128xf32>,
    %c0_1 = arith.constant 0 : index
    %c0_2 = arith.constant 0 : index
    %c0_3 = arith.constant 0 : index
    %2 = vector.load %arg1[%c0_1, %c0_2, %c0_3] : memref<1x16x128xf32, #tpu.memory_space<vmem>>, vector<1x16x128xf32>
    %3 = vector.shape_cast %2 : vector<1x16x128xf32> to vector<16x128xf32>
    %c4 = arith.constant 4 : index
    %c0_4 = arith.constant 0 : index
    %4 = vector.load %arg9[%c4, %c0_4] : memref<20x128xf32, #tpu.memory_space<vmem>>, vector<16x128xf32>
    tpu.vector_store %arg9[%c4, %c0_4], %3 {strides = array<i32>} : memref<20x128xf32, #tpu.memory_space<vmem>>, vector<16x128xf32>,
    %c0_5 = arith.constant 0 : index
    %c0_6 = arith.constant 0 : index
    %5 = vector.load %arg9[%c0_5, %c0_6] : memref<20x128xf32, #tpu.memory_space<vmem>>, vector<16x128xf32>
    %c1 = arith.constant 1 : index
    %c0_7 = arith.constant 0 : index
    %6 = vector.load %arg9[%c1, %c0_7] : memref<20x128xf32, #tpu.memory_space<vmem>>, vector<16x128xf32>
    %c2 = arith.constant 2 : index
    %c0_8 = arith.constant 0 : index
    %7 = vector.load %arg9[%c2, %c0_8] : memref<20x128xf32, #tpu.memory_space<vmem>>, vector<16x128xf32>
    %c3 = arith.constant 3 : index
    %c0_9 = arith.constant 0 : index
    %8 = vector.load %arg9[%c3, %c0_9] : memref<20x128xf32, #tpu.memory_space<vmem>>, vector<16x128xf32>
    %c4_10 = arith.constant 4 : index
    %c0_11 = arith.constant 0 : index
    %9 = vector.load %arg9[%c4_10, %c0_11] : memref<20x128xf32, #tpu.memory_space<vmem>>, vector<16x128xf32>
    %10 = tpu.concatenate %5, %6, %7, %8, %9 in 1 : vector<16x128xf32>, vector<16x128xf32>, vector<16x128xf32>, vector<16x128xf32>, vector<16x128xf32> -> vector<16x640xf32>
    %c0_12 = arith.constant 0 : index
    %c0_13 = arith.constant 0 : index
    %11 = vector.load %arg2[%c0_12, %c0_13] : memref<640x128xf32, #tpu.memory_space<vmem>>, vector<640x128xf32>
    %cst_14 = arith.constant dense<0.000000e+00> : vector<16x128xf32>
    %12 = tpu.matmul %10, %11, %cst_14 {dimension_numbers = #tpu.dot_dimension_numbers<[1], [0], [0], [1], [0, 0, 1, 1], [], []>} : vector<16x640xf32>, vector<640x128xf32>, vector<16x128xf32> -> vector<16x128xf32>
    %c0_15 = arith.constant 0 : index
    %c0_16 = arith.constant 0 : index
    %13 = vector.load %arg5[%c0_15, %c0_16] : memref<1x128xf32, #tpu.memory_space<vmem>>, vector<1x128xf32>
    %14 = vector.broadcast %13 : vector<1x128xf32> to vector<16x128xf32>
    %15 = arith.addf %12, %14 : vector<16x128xf32>
    %cst_17 = arith.constant 0.000000e+00 : f32
    %16 = vector.broadcast %cst_17 : f32 to vector<16x128xf32>
    %17 = arith.cmpf ogt, %15, %16 : vector<16x128xf32>
    %cst_18 = arith.constant 1.000000e-01 : f32
    %18 = vector.broadcast %cst_18 : f32 to vector<16x128xf32>
    %19 = arith.mulf %18, %15 : vector<16x128xf32>
    %20 = arith.select %17, %15, %19 : vector<16x128xi1>, vector<16x128xf32>
    %c4_19 = arith.constant 4 : index
    %c0_20 = arith.constant 0 : index
    %21 = vector.load %arg9[%c4_19, %c0_20] : memref<20x128xf32, #tpu.memory_space<vmem>>, vector<16x128xf32>
    tpu.vector_store %arg9[%c4_19, %c0_20], %20 {strides = array<i32>} : memref<20x128xf32, #tpu.memory_space<vmem>>, vector<16x128xf32>,
    %c2_21 = arith.constant 2 : index
    %c0_22 = arith.constant 0 : index
    %22 = vector.load %arg9[%c2_21, %c0_22] : memref<20x128xf32, #tpu.memory_space<vmem>>, vector<16x128xf32>
    %c3_23 = arith.constant 3 : index
    %c0_24 = arith.constant 0 : index
    %23 = vector.load %arg9[%c3_23, %c0_24] : memref<20x128xf32, #tpu.memory_space<vmem>>, vector<16x128xf32>
    %c4_25 = arith.constant 4 : index
    %c0_26 = arith.constant 0 : index
    %24 = vector.load %arg9[%c4_25, %c0_26] : memref<20x128xf32, #tpu.memory_space<vmem>>, vector<16x128xf32>
    %25 = tpu.concatenate %22, %23, %24 in 1 : vector<16x128xf32>, vector<16x128xf32>, vector<16x128xf32> -> vector<16x384xf32>
    %c0_27 = arith.constant 0 : index
    %c0_28 = arith.constant 0 : index
    %26 = vector.load %arg3[%c0_27, %c0_28] : memref<384x128xf32, #tpu.memory_space<vmem>>, vector<384x128xf32>
    %cst_29 = arith.constant dense<0.000000e+00> : vector<16x128xf32>
    %27 = tpu.matmul %25, %26, %cst_29 {dimension_numbers = #tpu.dot_dimension_numbers<[1], [0], [0], [1], [0, 0, 1, 1], [], []>} : vector<16x384xf32>, vector<384x128xf32>, vector<16x128xf32> -> vector<16x128xf32>
    %c0_30 = arith.constant 0 : index
    %c0_31 = arith.constant 0 : index
    %28 = vector.load %arg6[%c0_30, %c0_31] : memref<1x128xf32, #tpu.memory_space<vmem>>, vector<1x128xf32>
    %29 = vector.broadcast %28 : vector<1x128xf32> to vector<16x128xf32>
    %30 = arith.addf %27, %29 : vector<16x128xf32>
    %cst_32 = arith.constant 0.000000e+00 : f32
    %31 = vector.broadcast %cst_32 : f32 to vector<16x128xf32>
    %32 = arith.cmpf ogt, %30, %31 : vector<16x128xf32>
    %cst_33 = arith.constant 1.000000e-01 : f32
    %33 = vector.broadcast %cst_33 : f32 to vector<16x128xf32>
    %34 = arith.mulf %33, %30 : vector<16x128xf32>
    %35 = arith.select %32, %30, %34 : vector<16x128xi1>, vector<16x128xf32>
    %c4_34 = arith.constant 4 : index
    %c0_35 = arith.constant 0 : index
    %36 = vector.load %arg9[%c4_34, %c0_35] : memref<20x128xf32, #tpu.memory_space<vmem>>, vector<16x128xf32>
    tpu.vector_store %arg9[%c4_34, %c0_35], %35 {strides = array<i32>} : memref<20x128xf32, #tpu.memory_space<vmem>>, vector<16x128xf32>,
    %c2_36 = arith.constant 2 : index
    %c0_37 = arith.constant 0 : index
    %37 = vector.load %arg9[%c2_36, %c0_37] : memref<20x128xf32, #tpu.memory_space<vmem>>, vector<16x128xf32>
    %c3_38 = arith.constant 3 : index
    %c0_39 = arith.constant 0 : index
    %38 = vector.load %arg9[%c3_38, %c0_39] : memref<20x128xf32, #tpu.memory_space<vmem>>, vector<16x128xf32>
    %c4_40 = arith.constant 4 : index
    %c0_41 = arith.constant 0 : index
    %39 = vector.load %arg9[%c4_40, %c0_41] : memref<20x128xf32, #tpu.memory_space<vmem>>, vector<16x128xf32>
    %40 = tpu.concatenate %37, %38, %39 in 1 : vector<16x128xf32>, vector<16x128xf32>, vector<16x128xf32> -> vector<16x384xf32>
    %c0_42 = arith.constant 0 : index
    %c0_43 = arith.constant 0 : index
    %41 = vector.load %arg4[%c0_42, %c0_43] : memref<384x128xf32, #tpu.memory_space<vmem>>, vector<384x128xf32>
    %cst_44 = arith.constant dense<0.000000e+00> : vector<16x128xf32>
    %42 = tpu.matmul %40, %41, %cst_44 {dimension_numbers = #tpu.dot_dimension_numbers<[1], [0], [0], [1], [0, 0, 1, 1], [], []>} : vector<16x384xf32>, vector<384x128xf32>, vector<16x128xf32> -> vector<16x128xf32>
    %c0_45 = arith.constant 0 : index
    %c0_46 = arith.constant 0 : index
    %43 = vector.load %arg7[%c0_45, %c0_46] : memref<1x128xf32, #tpu.memory_space<vmem>>, vector<1x128xf32>
    %44 = vector.broadcast %43 : vector<1x128xf32> to vector<16x128xf32>
    %45 = arith.addf %42, %44 : vector<16x128xf32>
    %c0_47 = arith.constant 0 : index
    %c0_48 = arith.constant 0 : index
    %c0_49 = arith.constant 0 : index
    %46 = vector.load %arg8[%c0_47, %c0_48, %c0_49] : memref<1x16x128xf32, #tpu.memory_space<vmem>>, vector<1x16x128xf32>
    %47 = vector.shape_cast %46 : vector<1x16x128xf32> to vector<16x128xf32>
    %48 = vector.shape_cast %45 : vector<16x128xf32> to vector<1x16x128xf32>
    tpu.vector_store %arg8[%c0_47, %c0_48, %c0_49], %48 {strides = array<i32>} : memref<1x16x128xf32, #tpu.memory_space<vmem>>, vector<1x16x128xf32>,
    return
  }
  func.func @transform_0(%arg0: i32) -> (i32, i32, i32) {
    %c0_i32 = arith.constant 0 : i32
    %c0_i32_0 = arith.constant 0 : i32
    %c0_i32_1 = arith.constant 0 : i32
    return %arg0, %c0_i32, %c0_i32_0 : i32, i32, i32
  }
  func.func @transform_1(%arg0: i32) -> (i32, i32) {
    %c0_i32 = arith.constant 0 : i32
    %c0_i32_0 = arith.constant 0 : i32
    %c0_i32_1 = arith.constant 0 : i32
    return %c0_i32, %c0_i32_0 : i32, i32
  }
  func.func @transform_2(%arg0: i32) -> (i32, i32) {
    %c0_i32 = arith.constant 0 : i32
    %c0_i32_0 = arith.constant 0 : i32
    %c0_i32_1 = arith.constant 0 : i32
    return %c0_i32, %c0_i32_0 : i32, i32
  }
  func.func @transform_3(%arg0: i32) -> (i32, i32) {
    %c0_i32 = arith.constant 0 : i32
    %c0_i32_0 = arith.constant 0 : i32
    %c0_i32_1 = arith.constant 0 : i32
    return %c0_i32, %c0_i32_0 : i32, i32
  }
  func.func @transform_4(%arg0: i32) -> (i32, i32) {
    %c0_i32 = arith.constant 0 : i32
    %c0_i32_0 = arith.constant 0 : i32
    %c0_i32_1 = arith.constant 0 : i32
    return %c0_i32, %c0_i32_0 : i32, i32
  }
  func.func @transform_5(%arg0: i32) -> (i32, i32) {
    %c0_i32 = arith.constant 0 : i32
    %c0_i32_0 = arith.constant 0 : i32
    %c0_i32_1 = arith.constant 0 : i32
    return %c0_i32, %c0_i32_0 : i32, i32
  }
  func.func @transform_6(%arg0: i32) -> (i32, i32) {
    %c0_i32 = arith.constant 0 : i32
    %c0_i32_0 = arith.constant 0 : i32
    %c0_i32_1 = arith.constant 0 : i32
    return %c0_i32, %c0_i32_0 : i32, i32
  }
  func.func @transform_7(%arg0: i32) -> (i32, i32, i32) {
    %c0_i32 = arith.constant 0 : i32
    %c0_i32_0 = arith.constant 0 : i32
    %c0_i32_1 = arith.constant 0 : i32
    return %arg0, %c0_i32, %c0_i32_0 : i32, i32, i32
  }
}

</mosaic_0001>

<llo_original>
// kernel: tpu_custom_call.1
$region0: #{tpu_custom_call.1}
  #allocation0 [shape = 'u32[]', space=smem, size = 0x4, offset = 0x4, fixed_abs, tag = 'smem constant byte address 0x4 - core index']
  #allocation1 [shape = 'u32[72,128]{1,0:T(1,128)}', space=vmem, size = 0x9000, scoped, tag = 'internal scratch']
  #allocation2 [shape = 'f32[20,128]{1,0:T(8,128)}', space=vmem, size = 0x3000, scoped, tag = 'scratch operand']
  %s0 = inlined_call_operand.hbm [shape: f32[2,16,128], index: 0, kind: input, shape index: {}]
  %s1 = inlined_call_operand.hbm [shape: f32[640,128], index: 1, kind: input, shape index: {}]
  %s2 = inlined_call_operand.hbm [shape: f32[384,128], index: 2, kind: input, shape index: {}]
  %s3 = inlined_call_operand.hbm [shape: f32[384,128], index: 3, kind: input, shape index: {}]
  %s4 = inlined_call_operand.vmem [shape: f32[1,128], index: 4, kind: input, shape index: {}]
  %s5 = inlined_call_operand.vmem [shape: f32[1,128], index: 5, kind: input, shape index: {}]
  %s6 = inlined_call_operand.vmem [shape: f32[1,128], index: 6, kind: input, shape index: {}]
  %s7 = inlined_call_operand.hbm [shape: f32[2,16,128], index: 7, kind: output, shape index: {}]
  %s8 = sld [smem:[#allocation0]]
  $region77: #{tpu_custom_call.1} parent=0
    _
  %s10 = ssub.s32 1, %s8
  %s11 = scalar_select 0, %s10, %s8
  $region1: #{tpu_custom_call.1} parent=0
    #allocation3 [shape = 'u8[16384]{0}', space=vmem, size = 0x4000, scoped, tag = 'input window, operand 0']
    #allocation4 [shape = 's32[2]{0}', space=sflag, size = 0x8, scoped, tag = 'scoped memory for tpu_custom_call.1']
    #allocation5 [shape = 's32[2]{0}', space=sflag, size = 0x8, scoped, tag = 'scoped memory for tpu_custom_call.1']
    #allocation6 [shape = 'u8[327680]{0}', space=vmem, size = 0x50000, scoped, tag = 'input window, operand 1, single buffered']
    #allocation7 [shape = 's32[1]{0}', space=sflag, size = 0x4, scoped, tag = 'scoped memory for tpu_custom_call.1']
    #allocation8 [shape = 'u8[196608]{0}', space=vmem, size = 0x30000, scoped, tag = 'input window, operand 2, single buffered']
    #allocation9 [shape = 'u8[196608]{0}', space=vmem, size = 0x30000, scoped, tag = 'input window, operand 3, single buffered']
    #allocation10 [shape = 's32[1]{0}', space=sflag, size = 0x4, scoped, tag = 'scoped memory for tpu_custom_call.1']
    #allocation11 [shape = 'u8[16384]{0}', space=vmem, size = 0x4000, scoped, tag = 'output window, operand 0']
    %12 = vsyncpa [#allocation4], 0
    %s13 = scalar_lea.sflag [#allocation4], 1
    %14 = vsyncpa %s13, 0
    %15 = vsyncpa [#allocation7], 0
    %16 = vsyncpa [#allocation10], 0
    %17 = vsyncpa [#allocation5], 0
    %s18 = scalar_lea.sflag [#allocation5], 1
    %19 = vsyncpa %s18, 0
    loop: start=0, step=1, limit=4
    $region2: #{tpu_custom_call.1} parent=1 // loop_pre_header
      _
    $region3: #{tpu_custom_call.1} parent=1 // loop_header
      %s21 = sphi 0, %s25
      %p22 = scmp.ge.s32.totalorder %s21, 4
      %s31 = sphi 0, %s33
      %s34 = sphi 0, %s31
      %s35 = sphi 0, %s34
      %s51 = sphi 0, %s35
      %s55 = sphi 0, %s55
      %s57 = sphi 0, %s55
      %s58 = sphi 0, %s57
      %s72 = sphi 0, %s58
      %s76 = sphi 0, %s76
      %s78 = sphi 0, %s76
      %s79 = sphi 0, %s78
      %s93 = sphi 0, %s79
      %s97 = sphi 0, %s97
      %s99 = sphi 0, %s97
      %s100 = sphi 0, %s99
      %s114 = sphi 0, %s100
      %s118 = sphi 0, %s118
      %s120 = sphi 0, %s118
      %s121 = sphi 0, %s120
      %s135 = sphi 0, %s121
      %s139 = sphi 0, %s139
      %s141 = sphi 0, %s139
      %s142 = sphi 0, %s141
      %s156 = sphi 0, %s142
      %s160 = sphi 0, %s160
      %s162 = sphi 0, %s160
      %s163 = sphi 0, %s162
      %s177 = sphi 0, %s163
      %s183 = sphi 0, %s185
      %s186 = sphi 0, %s183
      %s187 = sphi 0, %s186
      %s203 = sphi 0, %s187
    $region4: #{tpu_custom_call.1} parent=1 // loop_header_branch
      %24 = sbr.rel (%p22) target = $region8
    $region5: #{tpu_custom_call.1} parent=1 // loop_body
      %s26 = ssub.s32 %s21, 1
      %s27 = ssub.s32 %s21, 2
      %s28 = sadd.s32 %s21, 1
      %s29 = ssub.s32 %s21, %s28
      %p30 = scmp.eq.s32.totalorder %s29, 0
      %s32 = sadd.s32 %s31, 1
      %s33 = scalar_select %p30, %s31, %s32
      %p36 = pneg %p30
      %p37 = scmp.eq.s32.totalorder %s21, 1
      %p38 = por %p36, %p37
      %p39 = scmp.ne.s32.totalorder %s31, %s34
      %p40 = scmp.eq.s32.totalorder %s21, 0
      %p41 = por %p39, %p40
      %p42 = scmp.ne.s32.totalorder %s31, %s34
      %p43 = scmp.eq.s32.totalorder %s26, 1
      %p44 = por %p42, %p43
      %p45 = scmp.ne.s32.totalorder %s34, %s35
      %p46 = scmp.eq.s32.totalorder %s26, 0
      %p47 = por %p45, %p46
      %p48 = scmp.ne.s32.totalorder %s34, %s35
      %p49 = scmp.eq.s32.totalorder %s27, 1
      %p50 = por %p48, %p49
      %p52 = scmp.ne.s32.totalorder %s35, %s51
      %p53 = scmp.eq.s32.totalorder %s27, 0
      %p54 = por %p52, %p53
      %s56 = sadd.s32 %s55, 1
      %p59 = scmp.eq.s32.totalorder %s21, 1
      %p60 = scmp.ne.s32.totalorder %s55, %s57
      %p61 = scmp.eq.s32.totalorder %s21, 0
      %p62 = por %p60, %p61
      %p63 = scmp.ne.s32.totalorder %s55, %s57
      %p64 = scmp.eq.s32.totalorder %s26, 1
      %p65 = por %p63, %p64
      %p66 = scmp.ne.s32.totalorder %s57, %s58
      %p67 = scmp.eq.s32.totalorder %s26, 0
      %p68 = por %p66, %p67
      %p69 = scmp.ne.s32.totalorder %s57, %s58
      %p70 = scmp.eq.s32.totalorder %s27, 1
      %p71 = por %p69, %p70
      %p73 = scmp.ne.s32.totalorder %s58, %s72
      %p74 = scmp.eq.s32.totalorder %s27, 0
      %p75 = por %p73, %p74
      %s77 = sadd.s32 %s76, 1
      %p80 = scmp.eq.s32.totalorder %s21, 1
      %p81 = scmp.ne.s32.totalorder %s76, %s78
      %p82 = scmp.eq.s32.totalorder %s21, 0
      %p83 = por %p81, %p82
      %p84 = scmp.ne.s32.totalorder %s76, %s78
      %p85 = scmp.eq.s32.totalorder %s26, 1
      %p86 = por %p84, %p85
      %p87 = scmp.ne.s32.totalorder %s78, %s79
      %p88 = scmp.eq.s32.totalorder %s26, 0
      %p89 = por %p87, %p88
      %p90 = scmp.ne.s32.totalorder %s78, %s79
      %p91 = scmp.eq.s32.totalorder %s27, 1
      %p92 = por %p90, %p91
      %p94 = scmp.ne.s32.totalorder %s79, %s93
      %p95 = scmp.eq.s32.totalorder %s27, 0
      %p96 = por %p94, %p95
      %s98 = sadd.s32 %s97, 1
      %p101 = scmp.eq.s32.totalorder %s21, 1
      %p102 = scmp.ne.s32.totalorder %s97, %s99
      %p103 = scmp.eq.s32.totalorder %s21, 0
      %p104 = por %p102, %p103
      %p105 = scmp.ne.s32.totalorder %s97, %s99
      %p106 = scmp.eq.s32.totalorder %s26, 1
      %p107 = por %p105, %p106
      %p108 = scmp.ne.s32.totalorder %s99, %s100
      %p109 = scmp.eq.s32.totalorder %s26, 0
      %p110 = por %p108, %p109
      %p111 = scmp.ne.s32.totalorder %s99, %s100
      %p112 = scmp.eq.s32.totalorder %s27, 1
      %p113 = por %p111, %p112
      %p115 = scmp.ne.s32.totalorder %s100, %s114
      %p116 = scmp.eq.s32.totalorder %s27, 0
      %p117 = por %p115, %p116
      %s119 = sadd.s32 %s118, 1
      %p122 = scmp.eq.s32.totalorder %s21, 1
      %p123 = scmp.ne.s32.totalorder %s118, %s120
      %p124 = scmp.eq.s32.totalorder %s21, 0
      %p125 = por %p123, %p124
      %p126 = scmp.ne.s32.totalorder %s118, %s120
      %p127 = scmp.eq.s32.totalorder %s26, 1
      %p128 = por %p126, %p127
      %p129 = scmp.ne.s32.totalorder %s120, %s121
      %p130 = scmp.eq.s32.totalorder %s26, 0
      %p131 = por %p129, %p130
      %p132 = scmp.ne.s32.totalorder %s120, %s121
      %p133 = scmp.eq.s32.totalorder %s27, 1
      %p134 = por %p132, %p133
      %p136 = scmp.ne.s32.totalorder %s121, %s135
      %p137 = scmp.eq.s32.totalorder %s27, 0
      %p138 = por %p136, %p137
      %s140 = sadd.s32 %s139, 1
      %p143 = scmp.eq.s32.totalorder %s21, 1
      %p144 = scmp.ne.s32.totalorder %s139, %s141
      %p145 = scmp.eq.s32.totalorder %s21, 0
      %p146 = por %p144, %p145
      %p147 = scmp.ne.s32.totalorder %s139, %s141
      %p148 = scmp.eq.s32.totalorder %s26, 1
      %p149 = por %p147, %p148
      %p150 = scmp.ne.s32.totalorder %s141, %s142
      %p151 = scmp.eq.s32.totalorder %s26, 0
      %p152 = por %p150, %p151
      %p153 = scmp.ne.s32.totalorder %s141, %s142
      %p154 = scmp.eq.s32.totalorder %s27, 1
      %p155 = por %p153, %p154
      %p157 = scmp.ne.s32.totalorder %s142, %s156
      %p158 = scmp.eq.s32.totalorder %s27, 0
      %p159 = por %p157, %p158
      %s161 = sadd.s32 %s160, 1
      %p164 = scmp.eq.s32.totalorder %s21, 1
      %p165 = scmp.ne.s32.totalorder %s160, %s162
      %p166 = scmp.eq.s32.totalorder %s21, 0
      %p167 = por %p165, %p166
      %p168 = scmp.ne.s32.totalorder %s160, %s162
      %p169 = scmp.eq.s32.totalorder %s26, 1
      %p170 = por %p168, %p169
      %p171 = scmp.ne.s32.totalorder %s162, %s163
      %p172 = scmp.eq.s32.totalorder %s26, 0
      %p173 = por %p171, %p172
      %p174 = scmp.ne.s32.totalorder %s162, %s163
      %p175 = scmp.eq.s32.totalorder %s27, 1
      %p176 = por %p174, %p175
      %p178 = scmp.ne.s32.totalorder %s163, %s177
      %p179 = scmp.eq.s32.totalorder %s27, 0
      %p180 = por %p178, %p179
      %s181 = ssub.s32 %s21, %s28
      %p182 = scmp.eq.s32.totalorder %s181, 0
      %s184 = sadd.s32 %s183, 1
      %s185 = scalar_select %p182, %s183, %s184
      %p188 = pneg %p182
      %p189 = scmp.eq.s32.totalorder %s21, 1
      %p190 = por %p188, %p189
      %p191 = scmp.ne.s32.totalorder %s183, %s186
      %p192 = scmp.eq.s32.totalorder %s21, 0
      %p193 = por %p191, %p192
      %p194 = scmp.ne.s32.totalorder %s183, %s186
      %p195 = scmp.eq.s32.totalorder %s26, 1
      %p196 = por %p194, %p195
      %p197 = scmp.ne.s32.totalorder %s186, %s187
      %p198 = scmp.eq.s32.totalorder %s26, 0
      %p199 = por %p197, %p198
      %p200 = scmp.ne.s32.totalorder %s186, %s187
      %p201 = scmp.eq.s32.totalorder %s27, 1
      %p202 = por %p200, %p201
      %p204 = scmp.ne.s32.totalorder %s187, %s203
      %p205 = scmp.eq.s32.totalorder %s27, 0
      %p206 = por %p204, %p205
      %p207 = scmp.le.s32.totalorder 1, %s21
      %p208 = scmp.lt.s32.totalorder %s21, 3
      %p209 = pnand %p207, %p208
      %p210 = pneg %p209
      // Predicated region
      $region9: #{tpu_custom_call.1} parent=5 // pred_check
        _
      $region10: #{tpu_custom_call.1} parent=5 // pred_check_branch
        %212 = sbr.rel (%p209) target = $region12
      $region11: #{tpu_custom_call.1} parent=5 // pred_region
        %s213 = ssub.s32 %s21, 1
        // Predicated region
        $region13: #{tpu_custom_call.1} parent=11 // pred_check
          %p214 = pneg %p68
        $region14: #{tpu_custom_call.1} parent=11 // pred_check_branch
          %216 = sbr.rel (%p214) target = $region16
        $region15: #{tpu_custom_call.1} parent=11 // pred_region
          %218 = vsyncadd [#allocation7], 0
          %s219 = sshll.u32 %s1, 4
          %s220 = int_to_ptr.hbm [resolvable:$true] %s219
          %s221 = sshll.u32 [#allocation6], 4
          %s222 = int_to_ptr.vmem [resolvable:$true] %s221
          %227 = dma.hbm_to_vmem [thread:$0]  %s220, 10240, %s222, [#allocation7], 128, 128, 8
        $region16: #{tpu_custom_call.1} parent=11 // pred_fallthru
          _
        // Predicated region
        $region17: #{tpu_custom_call.1} parent=11 // pred_check
          %p228 = pneg %p89
        $region18: #{tpu_custom_call.1} parent=11 // pred_check_branch
          %230 = sbr.rel (%p228) target = $region20
        $region19: #{tpu_custom_call.1} parent=11 // pred_region
          %232 = vsyncadd [#allocation7], 0
          %s233 = sshll.u32 %s2, 4
          %s234 = int_to_ptr.hbm [resolvable:$true] %s233
          %s235 = sshll.u32 [#allocation8], 4
          %s236 = int_to_ptr.vmem [resolvable:$true] %s235
          %241 = dma.hbm_to_vmem [thread:$0]  %s234, 6144, %s236, [#allocation7], 128, 128, 8
        $region20: #{tpu_custom_call.1} parent=11 // pred_fallthru
          _
        // Predicated region
        $region21: #{tpu_custom_call.1} parent=11 // pred_check
          %p242 = pneg %p110
        $region22: #{tpu_custom_call.1} parent=11 // pred_check_branch
          %244 = sbr.rel (%p242) target = $region24
        $region23: #{tpu_custom_call.1} parent=11 // pred_region
          %246 = vsyncadd [#allocation10], 0
          %s247 = sshll.u32 %s3, 4
          %s248 = int_to_ptr.hbm [resolvable:$true] %s247
          %s249 = sshll.u32 [#allocation9], 4
          %s250 = int_to_ptr.vmem [resolvable:$true] %s249
          %255 = dma.hbm_to_vmem [thread:$0]  %s248, 6144, %s250, [#allocation10], 128, 128, 8
        $region24: #{tpu_custom_call.1} parent=11 // pred_fallthru
          _
        // Predicated region
        $region25: #{tpu_custom_call.1} parent=11 // pred_check
          %p256 = pneg %p131
        $region26: #{tpu_custom_call.1} parent=11 // pred_check_branch
          %258 = sbr.rel (%p256) target = $region28
        $region27: #{tpu_custom_call.1} parent=11 // pred_region
          _
        $region28: #{tpu_custom_call.1} parent=11 // pred_fallthru
          _
        // Predicated region
        $region29: #{tpu_custom_call.1} parent=11 // pred_check
          %p259 = pneg %p152
        $region30: #{tpu_custom_call.1} parent=11 // pred_check_branch
          %261 = sbr.rel (%p259) target = $region32
        $region31: #{tpu_custom_call.1} parent=11 // pred_region
          _
        $region32: #{tpu_custom_call.1} parent=11 // pred_fallthru
          _
        // Predicated region
        $region33: #{tpu_custom_call.1} parent=11 // pred_check
          %p262 = pneg %p173
        $region34: #{tpu_custom_call.1} parent=11 // pred_check_branch
          %264 = sbr.rel (%p262) target = $region36
        $region35: #{tpu_custom_call.1} parent=11 // pred_region
          _
        $region36: #{tpu_custom_call.1} parent=11 // pred_fallthru
          _
      $region12: #{tpu_custom_call.1} parent=5 // pred_fallthru
        _
      %p265 = scmp.lt.s32.totalorder %s21, 2
      // Predicated region
      $region37: #{tpu_custom_call.1} parent=5 // pred_check
        %p266 = pneg %p265
      $region38: #{tpu_custom_call.1} parent=5 // pred_check_branch
        %268 = sbr.rel (%p266) target = $region40
      $region39: #{tpu_custom_call.1} parent=5 // pred_region
        // Predicated region
        $region41: #{tpu_custom_call.1} parent=39 // pred_check
          %p269 = pneg %p41
        $region42: #{tpu_custom_call.1} parent=39 // pred_check_branch
          %271 = sbr.rel (%p269) target = $region44
        $region43: #{tpu_custom_call.1} parent=39 // pred_region
          %s272 = sand.u32 %s31, 1
          %s273 = scalar_lea.sflag [#allocation4], %s272
          %s274 = sand.u32 %s31, 1
          %s275 = smul.addr %s274, 16
          %s276 = scalar_lea.vmem [#allocation3], %s275
          %278 = vsyncadd %s273, 0
          %s279 = smul.addr %s21, 2
          %s280 = smul.addr %s279, 8
          %s281 = scalar_lea.hbm %s0, %s280
          %s282 = sshll.u32 %s281, 4
          %s283 = int_to_ptr.hbm [resolvable:$true] %s282
          %s284 = sshll.u32 %s276, 4
          %s285 = int_to_ptr.vmem [resolvable:$true] %s284
          %290 = dma.hbm_to_vmem [thread:$0]  %s283, 256, %s285, %s273, 128, 128, 8
        $region44: #{tpu_custom_call.1} parent=39 // pred_fallthru
          _
      $region40: #{tpu_custom_call.1} parent=5 // pred_fallthru
        _
      %p291 = scmp.le.s32.totalorder 1, %s21
      %p292 = scmp.lt.s32.totalorder %s21, 3
      %p293 = pnand %p291, %p292
      %p294 = pneg %p293
      // Predicated region
      $region45: #{tpu_custom_call.1} parent=5 // pred_check
        _
      $region46: #{tpu_custom_call.1} parent=5 // pred_check_branch
        %296 = sbr.rel (%p293) target = $region48
      $region47: #{tpu_custom_call.1} parent=5 // pred_region
        %s297 = ssub.s32 %s21, 1
        %s298 = sand.u32 %s34, 1
        %s299 = scalar_lea.sflag [#allocation4], %s298
        %s300 = sand.u32 %s34, 1
        %s301 = smul.addr %s300, 16
        %s302 = scalar_lea.vmem [#allocation3], %s301
        // Predicated region
        $region49: #{tpu_custom_call.1} parent=47 // pred_check
          %p303 = pneg %p47
        $region50: #{tpu_custom_call.1} parent=47 // pred_check_branch
          %305 = sbr.rel (%p303) target = $region52
        $region51: #{tpu_custom_call.1} parent=47 // pred_region
          %307 = dma.done %s299, 256
        $region52: #{tpu_custom_call.1} parent=47 // pred_fallthru
          _
        // Predicated region
        $region53: #{tpu_custom_call.1} parent=47 // pred_check
          %p308 = pneg %p68
        $region54: #{tpu_custom_call.1} parent=47 // pred_check_branch
          %310 = sbr.rel (%p308) target = $region56
        $region55: #{tpu_custom_call.1} parent=47 // pred_region
          %312 = dma.done [#allocation7], 10240
        $region56: #{tpu_custom_call.1} parent=47 // pred_fallthru
          _
        // Predicated region
        $region57: #{tpu_custom_call.1} parent=47 // pred_check
          %p313 = pneg %p89
        $region58: #{tpu_custom_call.1} parent=47 // pred_check_branch
          %315 = sbr.rel (%p313) target = $region60
        $region59: #{tpu_custom_call.1} parent=47 // pred_region
          %317 = dma.done [#allocation7], 6144
        $region60: #{tpu_custom_call.1} parent=47 // pred_fallthru
          _
        // Predicated region
        $region61: #{tpu_custom_call.1} parent=47 // pred_check
          %p318 = pneg %p110
        $region62: #{tpu_custom_call.1} parent=47 // pred_check_branch
          %320 = sbr.rel (%p318) target = $region64
        $region63: #{tpu_custom_call.1} parent=47 // pred_region
          %322 = dma.done [#allocation10], 6144
        $region64: #{tpu_custom_call.1} parent=47 // pred_fallthru
          _
        %s323 = sand.u32 %s34, 1
        %s324 = scalar_lea.sflag [#allocation4], %s323
        %s325 = sand.u32 %s34, 1
        %s326 = smul.addr %s325, 16
        %s327 = scalar_lea.vmem [#allocation3], %s326
        %p328 = pneg %p47
        %p329 = pneg %p44
        %p330 = pneg %p68
        %p331 = pneg %p65
        %p332 = pneg %p89
        %p333 = pneg %p86
        %p334 = pneg %p110
        %p335 = pneg %p107
        %p336 = pneg %p131
        %p337 = pneg %p128
        %p338 = pneg %p152
        %p339 = pneg %p149
        %p340 = pneg %p173
        %p341 = pneg %p170
        %p342 = pneg %p199
        %p343 = pneg %p196
        %s344 = sand.u32 %s186, 1
        %s345 = scalar_lea.sflag [#allocation5], %s344
        %s346 = sand.u32 %s186, 1
        %s347 = smul.addr %s346, 16
        %s348 = scalar_lea.vmem [#allocation11], %s347
        %349 = vst [vmem:[#allocation2] sm:$0xf] 0.0
        %v350 = vld [vmem:[%s302] sm:$0xff]
        %v351 = vld [vmem:[%s302 + $0x8] sm:$0xff]
        %352 = vst [vmem:[#allocation2 + $0x4] sm:$0xff] %v350
        %353 = vst [vmem:[#allocation2 + $0xc] sm:$0xff] %v351
        %v354 = vld [vmem:[#allocation2] sm:$0xff]
        %v355 = vld [vmem:[#allocation2 + $0x8] sm:$0xff]
        %v356 = vld [vmem:[#allocation2 + $0x1] sm:$0xff]
        %v357 = vld [vmem:[#allocation2 + $0x9] sm:$0xff]
        %v358 = vld [vmem:[#allocation2 + $0x2] sm:$0xff]
        %v359 = vld [vmem:[#allocation2 + $0xa] sm:$0xff]
        %v360 = vld [vmem:[#allocation2 + $0x3] sm:$0xff]
        %v361 = vld [vmem:[#allocation2 + $0xb] sm:$0xff]
        %v362 = vld [vmem:[#allocation2 + $0x4] sm:$0xff]
        %v363 = vld [vmem:[#allocation2 + $0xc] sm:$0xff]
        %v364 = vld [vmem:[#allocation6] sm:$0xff]
        %v365 = vld [vmem:[#allocation6 + $0x8] sm:$0xff]
        %v366 = vld [vmem:[#allocation6 + $0x10] sm:$0xff]
        %v367 = vld [vmem:[#allocation6 + $0x18] sm:$0xff]
        %v368 = vld [vmem:[#allocation6 + $0x20] sm:$0xff]
        %v369 = vld [vmem:[#allocation6 + $0x28] sm:$0xff]
        %v370 = vld [vmem:[#allocation6 + $0x30] sm:$0xff]
        %v371 = vld [vmem:[#allocation6 + $0x38] sm:$0xff]
        %v372 = vld [vmem:[#allocation6 + $0x40] sm:$0xff]
        %v373 = vld [vmem:[#allocation6 + $0x48] sm:$0xff]
        %v374 = vld [vmem:[#allocation6 + $0x50] sm:$0xff]
        %v375 = vld [vmem:[#allocation6 + $0x58] sm:$0xff]
        %v376 = vld [vmem:[#allocation6 + $0x60] sm:$0xff]
        %v377 = vld [vmem:[#allocation6 + $0x68] sm:$0xff]
        %v378 = vld [vmem:[#allocation6 + $0x70] sm:$0xff]
        %v379 = vld [vmem:[#allocation6 + $0x78] sm:$0xff]
        %v380 = vld [vmem:[#allocation6 + $0x80] sm:$0xff]
        %v381 = vld [vmem:[#allocation6 + $0x88] sm:$0xff]
        %v382 = vld [vmem:[#allocation6 + $0x90] sm:$0xff]
        %v383 = vld [vmem:[#allocation6 + $0x98] sm:$0xff]
        %v384 = vld [vmem:[#allocation6 + $0xa0] sm:$0xff]
        %v385 = vld [vmem:[#allocation6 + $0xa8] sm:$0xff]
        %v386 = vld [vmem:[#allocation6 + $0xb0] sm:$0xff]
        %v387 = vld [vmem:[#allocation6 + $0xb8] sm:$0xff]
        %v388 = vld [vmem:[#allocation6 + $0xc0] sm:$0xff]
        %v389 = vld [vmem:[#allocation6 + $0xc8] sm:$0xff]
        %v390 = vld [vmem:[#allocation6 + $0xd0] sm:$0xff]
        %v391 = vld [vmem:[#allocation6 + $0xd8] sm:$0xff]
        %v392 = vld [vmem:[#allocation6 + $0xe0] sm:$0xff]
        %v393 = vld [vmem:[#allocation6 + $0xe8] sm:$0xff]
        %v394 = vld [vmem:[#allocation6 + $0xf0] sm:$0xff]
        %v395 = vld [vmem:[#allocation6 + $0xf8] sm:$0xff]
        %v396 = vld [vmem:[#allocation6 + $0x100] sm:$0xff]
        %v397 = vld [vmem:[#allocation6 + $0x108] sm:$0xff]
        %v398 = vld [vmem:[#allocation6 + $0x110] sm:$0xff]
        %v399 = vld [vmem:[#allocation6 + $0x118] sm:$0xff]
        %v400 = vld [vmem:[#allocation6 + $0x120] sm:$0xff]
        %v401 = vld [vmem:[#allocation6 + $0x128] sm:$0xff]
        %v402 = vld [vmem:[#allocation6 + $0x130] sm:$0xff]
        %v403 = vld [vmem:[#allocation6 + $0x138] sm:$0xff]
        %v404 = vld [vmem:[#allocation6 + $0x140] sm:$0xff]
        %v405 = vld [vmem:[#allocation6 + $0x148] sm:$0xff]
        %v406 = vld [vmem:[#allocation6 + $0x150] sm:$0xff]
        %v407 = vld [vmem:[#allocation6 + $0x158] sm:$0xff]
        %v408 = vld [vmem:[#allocation6 + $0x160] sm:$0xff]
        %v409 = vld [vmem:[#allocation6 + $0x168] sm:$0xff]
        %v410 = vld [vmem:[#allocation6 + $0x170] sm:$0xff]
        %v411 = vld [vmem:[#allocation6 + $0x178] sm:$0xff]
        %v412 = vld [vmem:[#allocation6 + $0x180] sm:$0xff]
        %v413 = vld [vmem:[#allocation6 + $0x188] sm:$0xff]
        %v414 = vld [vmem:[#allocation6 + $0x190] sm:$0xff]
        %v415 = vld [vmem:[#allocation6 + $0x198] sm:$0xff]
        %v416 = vld [vmem:[#allocation6 + $0x1a0] sm:$0xff]
        %v417 = vld [vmem:[#allocation6 + $0x1a8] sm:$0xff]
        %v418 = vld [vmem:[#allocation6 + $0x1b0] sm:$0xff]
        %v419 = vld [vmem:[#allocation6 + $0x1b8] sm:$0xff]
        %v420 = vld [vmem:[#allocation6 + $0x1c0] sm:$0xff]
        %v421 = vld [vmem:[#allocation6 + $0x1c8] sm:$0xff]
        %v422 = vld [vmem:[#allocation6 + $0x1d0] sm:$0xff]
        %v423 = vld [vmem:[#allocation6 + $0x1d8] sm:$0xff]
        %v424 = vld [vmem:[#allocation6 + $0x1e0] sm:$0xff]
        %v425 = vld [vmem:[#allocation6 + $0x1e8] sm:$0xff]
        %v426 = vld [vmem:[#allocation6 + $0x1f0] sm:$0xff]
        %v427 = vld [vmem:[#allocation6 + $0x1f8] sm:$0xff]
        %v428 = vld [vmem:[#allocation6 + $0x200] sm:$0xff]
        %v429 = vld [vmem:[#allocation6 + $0x208] sm:$0xff]
        %v430 = vld [vmem:[#allocation6 + $0x210] sm:$0xff]
        %v431 = vld [vmem:[#allocation6 + $0x218] sm:$0xff]
        %v432 = vld [vmem:[#allocation6 + $0x220] sm:$0xff]
        %v433 = vld [vmem:[#allocation6 + $0x228] sm:$0xff]
        %v434 = vld [vmem:[#allocation6 + $0x230] sm:$0xff]
        %v435 = vld [vmem:[#allocation6 + $0x238] sm:$0xff]
        %v436 = vld [vmem:[#allocation6 + $0x240] sm:$0xff]
        %v437 = vld [vmem:[#allocation6 + $0x248] sm:$0xff]
        %v438 = vld [vmem:[#allocation6 + $0x250] sm:$0xff]
        %v439 = vld [vmem:[#allocation6 + $0x258] sm:$0xff]
        %v440 = vld [vmem:[#allocation6 + $0x260] sm:$0xff]
        %v441 = vld [vmem:[#allocation6 + $0x268] sm:$0xff]
        %v442 = vld [vmem:[#allocation6 + $0x270] sm:$0xff]
        %v443 = vld [vmem:[#allocation6 + $0x278] sm:$0xff]
        %v444 = vld [vmem:[%s4] sm:$0x1]
        %v446 = vperm.slane %v444, 0
        %448 = vmatpush.msra.mxu0 %v379
        %449 = vmatpush.msra.mxu0 %v378
        %450 = vmatpush.msra.mxu0 %v377
        %451 = vmatpush.msra.mxu0 %v376
        %452 = vmatpush.msra.mxu0 %v375
        %453 = vmatpush.msra.mxu0 %v374
        %454 = vmatpush.msra.mxu0 %v373
        %455 = vmatpush.msra.mxu0 %v372
        %456 = vmatpush.msra.mxu0 %v371
        %457 = vmatpush.msra.mxu0 %v370
        %458 = vmatpush.msra.mxu0 %v369
        %459 = vmatpush.msra.mxu0 %v368
        %460 = vmatpush.msra.mxu0 %v367
        %461 = vmatpush.msra.mxu0 %v366
        %462 = vmatpush.msra.mxu0 %v365
        %463 = vmatpush.msra.mxu0 %v364
        %464 = vmatmul.f32.gmra.mxu0 %v354
        %v465 = vpop.f32.mrf.mxu0
        %v466 = vadd.f32 %v446, %v465
        %467 = vmatmul.f32.gmra.mxu0 %v355
        %v468 = vpop.f32.mrf.mxu0
        %v469 = vadd.f32 %v446, %v468
        %470 = vdwg.mxu0
        %471 = vmatpush.msra.mxu0 %v395
        %472 = vmatpush.msra.mxu0 %v394
        %473 = vmatpush.msra.mxu0 %v393
        %474 = vmatpush.msra.mxu0 %v392
        %475 = vmatpush.msra.mxu0 %v391
        %476 = vmatpush.msra.mxu0 %v390
        %477 = vmatpush.msra.mxu0 %v389
        %478 = vmatpush.msra.mxu0 %v388
        %479 = vmatpush.msra.mxu0 %v387
        %480 = vmatpush.msra.mxu0 %v386
        %481 = vmatpush.msra.mxu0 %v385
        %482 = vmatpush.msra.mxu0 %v384
        %483 = vmatpush.msra.mxu0 %v383
        %484 = vmatpush.msra.mxu0 %v382
        %485 = vmatpush.msra.mxu0 %v381
        %486 = vmatpush.msra.mxu0 %v380
        %487 = vmatmul.f32.gmra.mxu0 %v356
        %v488 = vpop.f32.mrf.mxu0
        %v489 = vadd.f32 %v466, %v488
        %490 = vmatmul.f32.gmra.mxu0 %v357
        %v491 = vpop.f32.mrf.mxu0
        %v492 = vadd.f32 %v469, %v491
        %493 = vdwg.mxu0
        %494 = vmatpush.msra.mxu0 %v411
        %495 = vmatpush.msra.mxu0 %v410
        %496 = vmatpush.msra.mxu0 %v409
        %497 = vmatpush.msra.mxu0 %v408
        %498 = vmatpush.msra.mxu0 %v407
        %499 = vmatpush.msra.mxu0 %v406
        %500 = vmatpush.msra.mxu0 %v405
        %501 = vmatpush.msra.mxu0 %v404
        %502 = vmatpush.msra.mxu0 %v403
        %503 = vmatpush.msra.mxu0 %v402
        %504 = vmatpush.msra.mxu0 %v401
        %505 = vmatpush.msra.mxu0 %v400
        %506 = vmatpush.msra.mxu0 %v399
        %507 = vmatpush.msra.mxu0 %v398
        %508 = vmatpush.msra.mxu0 %v397
        %509 = vmatpush.msra.mxu0 %v396
        %510 = vmatmul.f32.gmra.mxu0 %v358
        %v511 = vpop.f32.mrf.mxu0
        %v512 = vadd.f32 %v489, %v511
        %513 = vmatmul.f32.gmra.mxu0 %v359
        %v514 = vpop.f32.mrf.mxu0
        %v515 = vadd.f32 %v492, %v514
        %516 = vdwg.mxu0
        %517 = vmatpush.msra.mxu0 %v427
        %518 = vmatpush.msra.mxu0 %v426
        %519 = vmatpush.msra.mxu0 %v425
        %520 = vmatpush.msra.mxu0 %v424
        %521 = vmatpush.msra.mxu0 %v423
        %522 = vmatpush.msra.mxu0 %v422
        %523 = vmatpush.msra.mxu0 %v421
        %524 = vmatpush.msra.mxu0 %v420
        %525 = vmatpush.msra.mxu0 %v419
        %526 = vmatpush.msra.mxu0 %v418
        %527 = vmatpush.msra.mxu0 %v417
        %528 = vmatpush.msra.mxu0 %v416
        %529 = vmatpush.msra.mxu0 %v415
        %530 = vmatpush.msra.mxu0 %v414
        %531 = vmatpush.msra.mxu0 %v413
        %532 = vmatpush.msra.mxu0 %v412
        %533 = vmatmul.f32.gmra.mxu0 %v360
        %v534 = vpop.f32.mrf.mxu0
        %v535 = vadd.f32 %v512, %v534
        %536 = vmatmul.f32.gmra.mxu0 %v361
        %v537 = vpop.f32.mrf.mxu0
        %v538 = vadd.f32 %v515, %v537
        %539 = vdwg.mxu0
        %540 = vmatpush.msra.mxu0 %v443
        %541 = vmatpush.msra.mxu0 %v442
        %542 = vmatpush.msra.mxu0 %v441
        %543 = vmatpush.msra.mxu0 %v440
        %544 = vmatpush.msra.mxu0 %v439
        %545 = vmatpush.msra.mxu0 %v438
        %546 = vmatpush.msra.mxu0 %v437
        %547 = vmatpush.msra.mxu0 %v436
        %548 = vmatpush.msra.mxu0 %v435
        %549 = vmatpush.msra.mxu0 %v434
        %550 = vmatpush.msra.mxu0 %v433
        %551 = vmatpush.msra.mxu0 %v432
        %552 = vmatpush.msra.mxu0 %v431
        %553 = vmatpush.msra.mxu0 %v430
        %554 = vmatpush.msra.mxu0 %v429
        %555 = vmatpush.msra.mxu0 %v428
        %556 = vmatmul.f32.gmra.mxu0 %v362
        %v557 = vpop.f32.mrf.mxu0
        %v558 = vadd.f32 %v535, %v557
        %559 = vmatmul.f32.gmra.mxu0 %v363
        %v560 = vpop.f32.mrf.mxu0
        %v561 = vadd.f32 %v538, %v560
        %562 = vdwg.mxu0
        %vm563 = vcmp.gt.f32.partialorder %v558, 0.0
        %vm564 = vcmp.gt.f32.partialorder %v561, 0.0
        %v565 = vmul.f32 %v558, 0.1
        %v566 = vmul.f32 %v561, 0.1
        %v567 = vsel %vm563, %v558, %v565
        %v568 = vsel %vm564, %v561, %v566
        %569 = vst [vmem:[#allocation2 + $0x4] sm:$0xff] %v567
        %570 = vst [vmem:[#allocation2 + $0xc] sm:$0xff] %v568
        %v571 = vld [vmem:[#allocation2 + $0x2] sm:$0xff]
        %v572 = vld [vmem:[#allocation2 + $0xa] sm:$0xff]
        %v573 = vld [vmem:[#allocation2 + $0x3] sm:$0xff]
        %v574 = vld [vmem:[#allocation2 + $0xb] sm:$0xff]
        %v575 = vld [vmem:[#allocation2 + $0x4] sm:$0xff]
        %v576 = vld [vmem:[#allocation2 + $0xc] sm:$0xff]
        %v577 = vld [vmem:[#allocation8] sm:$0xff]
        %v578 = vld [vmem:[#allocation8 + $0x8] sm:$0xff]
        %v579 = vld [vmem:[#allocation8 + $0x10] sm:$0xff]
        %v580 = vld [vmem:[#allocation8 + $0x18] sm:$0xff]
        %v581 = vld [vmem:[#allocation8 + $0x20] sm:$0xff]
        %v582 = vld [vmem:[#allocation8 + $0x28] sm:$0xff]
        %v583 = vld [vmem:[#allocation8 + $0x30] sm:$0xff]
        %v584 = vld [vmem:[#allocation8 + $0x38] sm:$0xff]
        %v585 = vld [vmem:[#allocation8 + $0x40] sm:$0xff]
        %v586 = vld [vmem:[#allocation8 + $0x48] sm:$0xff]
        %v587 = vld [vmem:[#allocation8 + $0x50] sm:$0xff]
        %v588 = vld [vmem:[#allocation8 + $0x58] sm:$0xff]
        %v589 = vld [vmem:[#allocation8 + $0x60] sm:$0xff]
        %v590 = vld [vmem:[#allocation8 + $0x68] sm:$0xff]
        %v591 = vld [vmem:[#allocation8 + $0x70] sm:$0xff]
        %v592 = vld [vmem:[#allocation8 + $0x78] sm:$0xff]
        %v593 = vld [vmem:[#allocation8 + $0x80] sm:$0xff]
        %v594 = vld [vmem:[#allocation8 + $0x88] sm:$0xff]
        %v595 = vld [vmem:[#allocation8 + $0x90] sm:$0xff]
        %v596 = vld [vmem:[#allocation8 + $0x98] sm:$0xff]
        %v597 = vld [vmem:[#allocation8 + $0xa0] sm:$0xff]
        %v598 = vld [vmem:[#allocation8 + $0xa8] sm:$0xff]
        %v599 = vld [vmem:[#allocation8 + $0xb0] sm:$0xff]
        %v600 = vld [vmem:[#allocation8 + $0xb8] sm:$0xff]
        %v601 = vld [vmem:[#allocation8 + $0xc0] sm:$0xff]
        %v602 = vld [vmem:[#allocation8 + $0xc8] sm:$0xff]
        %v603 = vld [vmem:[#allocation8 + $0xd0] sm:$0xff]
        %v604 = vld [vmem:[#allocation8 + $0xd8] sm:$0xff]
        %v605 = vld [vmem:[#allocation8 + $0xe0] sm:$0xff]
        %v606 = vld [vmem:[#allocation8 + $0xe8] sm:$0xff]
        %v607 = vld [vmem:[#allocation8 + $0xf0] sm:$0xff]
        %v608 = vld [vmem:[#allocation8 + $0xf8] sm:$0xff]
        %v609 = vld [vmem:[#allocation8 + $0x100] sm:$0xff]
        %v610 = vld [vmem:[#allocation8 + $0x108] sm:$0xff]
        %v611 = vld [vmem:[#allocation8 + $0x110] sm:$0xff]
        %v612 = vld [vmem:[#allocation8 + $0x118] sm:$0xff]
        %v613 = vld [vmem:[#allocation8 + $0x120] sm:$0xff]
        %v614 = vld [vmem:[#allocation8 + $0x128] sm:$0xff]
        %v615 = vld [vmem:[#allocation8 + $0x130] sm:$0xff]
        %v616 = vld [vmem:[#allocation8 + $0x138] sm:$0xff]
        %v617 = vld [vmem:[#allocation8 + $0x140] sm:$0xff]
        %v618 = vld [vmem:[#allocation8 + $0x148] sm:$0xff]
        %v619 = vld [vmem:[#allocation8 + $0x150] sm:$0xff]
        %v620 = vld [vmem:[#allocation8 + $0x158] sm:$0xff]
        %v621 = vld [vmem:[#allocation8 + $0x160] sm:$0xff]
        %v622 = vld [vmem:[#allocation8 + $0x168] sm:$0xff]
        %v623 = vld [vmem:[#allocation8 + $0x170] sm:$0xff]
        %v624 = vld [vmem:[#allocation8 + $0x178] sm:$0xff]
        %v625 = vld [vmem:[%s5] sm:$0x1]
        %v627 = vperm.slane %v625, 0
        %629 = vmatpush.msra.mxu0 %v592
        %630 = vmatpush.msra.mxu0 %v591
        %631 = vmatpush.msra.mxu0 %v590
        %632 = vmatpush.msra.mxu0 %v589
        %633 = vmatpush.msra.mxu0 %v588
        %634 = vmatpush.msra.mxu0 %v587
        %635 = vmatpush.msra.mxu0 %v586
        %636 = vmatpush.msra.mxu0 %v585
        %637 = vmatpush.msra.mxu0 %v584
        %638 = vmatpush.msra.mxu0 %v583
        %639 = vmatpush.msra.mxu0 %v582
        %640 = vmatpush.msra.mxu0 %v581
        %641 = vmatpush.msra.mxu0 %v580
        %642 = vmatpush.msra.mxu0 %v579
        %643 = vmatpush.msra.mxu0 %v578
        %644 = vmatpush.msra.mxu0 %v577
        %645 = vmatmul.f32.gmra.mxu0 %v571
        %v646 = vpop.f32.mrf.mxu0
        %v647 = vadd.f32 %v627, %v646
        %648 = vmatmul.f32.gmra.mxu0 %v572
        %v649 = vpop.f32.mrf.mxu0
        %v650 = vadd.f32 %v627, %v649
        %651 = vdwg.mxu0
        %652 = vmatpush.msra.mxu0 %v608
        %653 = vmatpush.msra.mxu0 %v607
        %654 = vmatpush.msra.mxu0 %v606
        %655 = vmatpush.msra.mxu0 %v605
        %656 = vmatpush.msra.mxu0 %v604
        %657 = vmatpush.msra.mxu0 %v603
        %658 = vmatpush.msra.mxu0 %v602
        %659 = vmatpush.msra.mxu0 %v601
        %660 = vmatpush.msra.mxu0 %v600
        %661 = vmatpush.msra.mxu0 %v599
        %662 = vmatpush.msra.mxu0 %v598
        %663 = vmatpush.msra.mxu0 %v597
        %664 = vmatpush.msra.mxu0 %v596
        %665 = vmatpush.msra.mxu0 %v595
        %666 = vmatpush.msra.mxu0 %v594
        %667 = vmatpush.msra.mxu0 %v593
        %668 = vmatmul.f32.gmra.mxu0 %v573
        %v669 = vpop.f32.mrf.mxu0
        %v670 = vadd.f32 %v647, %v669
        %671 = vmatmul.f32.gmra.mxu0 %v574
        %v672 = vpop.f32.mrf.mxu0
        %v673 = vadd.f32 %v650, %v672
        %674 = vdwg.mxu0
        %675 = vmatpush.msra.mxu0 %v624
        %676 = vmatpush.msra.mxu0 %v623
        %677 = vmatpush.msra.mxu0 %v622
        %678 = vmatpush.msra.mxu0 %v621
        %679 = vmatpush.msra.mxu0 %v620
        %680 = vmatpush.msra.mxu0 %v619
        %681 = vmatpush.msra.mxu0 %v618
        %682 = vmatpush.msra.mxu0 %v617
        %683 = vmatpush.msra.mxu0 %v616
        %684 = vmatpush.msra.mxu0 %v615
        %685 = vmatpush.msra.mxu0 %v614
        %686 = vmatpush.msra.mxu0 %v613
        %687 = vmatpush.msra.mxu0 %v612
        %688 = vmatpush.msra.mxu0 %v611
        %689 = vmatpush.msra.mxu0 %v610
        %690 = vmatpush.msra.mxu0 %v609
        %691 = vmatmul.f32.gmra.mxu0 %v575
        %v692 = vpop.f32.mrf.mxu0
        %v693 = vadd.f32 %v670, %v692
        %694 = vmatmul.f32.gmra.mxu0 %v576
        %v695 = vpop.f32.mrf.mxu0
        %v696 = vadd.f32 %v673, %v695
        %697 = vdwg.mxu0
        %vm698 = vcmp.gt.f32.partialorder %v693, 0.0
        %vm699 = vcmp.gt.f32.partialorder %v696, 0.0
        %v700 = vmul.f32 %v693, 0.1
        %v701 = vmul.f32 %v696, 0.1
        %v702 = vsel %vm698, %v693, %v700
        %v703 = vsel %vm699, %v696, %v701
        %704 = vst [vmem:[#allocation2 + $0x4] sm:$0xff] %v702
        %705 = vst [vmem:[#allocation2 + $0xc] sm:$0xff] %v703
        %v706 = vld [vmem:[#allocation2 + $0x2] sm:$0xff]
        %v707 = vld [vmem:[#allocation2 + $0xa] sm:$0xff]
        %v708 = vld [vmem:[#allocation2 + $0x3] sm:$0xff]
        %v709 = vld [vmem:[#allocation2 + $0xb] sm:$0xff]
        %v710 = vld [vmem:[#allocation2 + $0x4] sm:$0xff]
        %v711 = vld [vmem:[#allocation2 + $0xc] sm:$0xff]
        %v712 = vld [vmem:[#allocation9] sm:$0xff]
        %v713 = vld [vmem:[#allocation9 + $0x8] sm:$0xff]
        %v714 = vld [vmem:[#allocation9 + $0x10] sm:$0xff]
        %v715 = vld [vmem:[#allocation9 + $0x18] sm:$0xff]
        %v716 = vld [vmem:[#allocation9 + $0x20] sm:$0xff]
        %v717 = vld [vmem:[#allocation9 + $0x28] sm:$0xff]
        %v718 = vld [vmem:[#allocation9 + $0x30] sm:$0xff]
        %v719 = vld [vmem:[#allocation9 + $0x38] sm:$0xff]
        %v720 = vld [vmem:[#allocation9 + $0x40] sm:$0xff]
        %v721 = vld [vmem:[#allocation9 + $0x48] sm:$0xff]
        %v722 = vld [vmem:[#allocation9 + $0x50] sm:$0xff]
        %v723 = vld [vmem:[#allocation9 + $0x58] sm:$0xff]
        %v724 = vld [vmem:[#allocation9 + $0x60] sm:$0xff]
        %v725 = vld [vmem:[#allocation9 + $0x68] sm:$0xff]
        %v726 = vld [vmem:[#allocation9 + $0x70] sm:$0xff]
        %v727 = vld [vmem:[#allocation9 + $0x78] sm:$0xff]
        %v728 = vld [vmem:[#allocation9 + $0x80] sm:$0xff]
        %v729 = vld [vmem:[#allocation9 + $0x88] sm:$0xff]
        %v730 = vld [vmem:[#allocation9 + $0x90] sm:$0xff]
        %v731 = vld [vmem:[#allocation9 + $0x98] sm:$0xff]
        %v732 = vld [vmem:[#allocation9 + $0xa0] sm:$0xff]
        %v733 = vld [vmem:[#allocation9 + $0xa8] sm:$0xff]
        %v734 = vld [vmem:[#allocation9 + $0xb0] sm:$0xff]
        %v735 = vld [vmem:[#allocation9 + $0xb8] sm:$0xff]
        %v736 = vld [vmem:[#allocation9 + $0xc0] sm:$0xff]
        %v737 = vld [vmem:[#allocation9 + $0xc8] sm:$0xff]
        %v738 = vld [vmem:[#allocation9 + $0xd0] sm:$0xff]
        %v739 = vld [vmem:[#allocation9 + $0xd8] sm:$0xff]
        %v740 = vld [vmem:[#allocation9 + $0xe0] sm:$0xff]
        %v741 = vld [vmem:[#allocation9 + $0xe8] sm:$0xff]
        %v742 = vld [vmem:[#allocation9 + $0xf0] sm:$0xff]
        %v743 = vld [vmem:[#allocation9 + $0xf8] sm:$0xff]
        %v744 = vld [vmem:[#allocation9 + $0x100] sm:$0xff]
        %v745 = vld [vmem:[#allocation9 + $0x108] sm:$0xff]
        %v746 = vld [vmem:[#allocation9 + $0x110] sm:$0xff]
        %v747 = vld [vmem:[#allocation9 + $0x118] sm:$0xff]
        %v748 = vld [vmem:[#allocation9 + $0x120] sm:$0xff]
        %v749 = vld [vmem:[#allocation9 + $0x128] sm:$0xff]
        %v750 = vld [vmem:[#allocation9 + $0x130] sm:$0xff]
        %v751 = vld [vmem:[#allocation9 + $0x138] sm:$0xff]
        %v752 = vld [vmem:[#allocation9 + $0x140] sm:$0xff]
        %v753 = vld [vmem:[#allocation9 + $0x148] sm:$0xff]
        %v754 = vld [vmem:[#allocation9 + $0x150] sm:$0xff]
        %v755 = vld [vmem:[#allocation9 + $0x158] sm:$0xff]
        %v756 = vld [vmem:[#allocation9 + $0x160] sm:$0xff]
        %v757 = vld [vmem:[#allocation9 + $0x168] sm:$0xff]
        %v758 = vld [vmem:[#allocation9 + $0x170] sm:$0xff]
        %v759 = vld [vmem:[#allocation9 + $0x178] sm:$0xff]
        %v760 = vld [vmem:[%s6] sm:$0x1]
        %v762 = vperm.slane %v760, 0
        %764 = vmatpush.msra.mxu0 %v727
        %765 = vmatpush.msra.mxu0 %v726
        %766 = vmatpush.msra.mxu0 %v725
        %767 = vmatpush.msra.mxu0 %v724
        %768 = vmatpush.msra.mxu0 %v723
        %769 = vmatpush.msra.mxu0 %v722
        %770 = vmatpush.msra.mxu0 %v721
        %771 = vmatpush.msra.mxu0 %v720
        %772 = vmatpush.msra.mxu0 %v719
        %773 = vmatpush.msra.mxu0 %v718
        %774 = vmatpush.msra.mxu0 %v717
        %775 = vmatpush.msra.mxu0 %v716
        %776 = vmatpush.msra.mxu0 %v715
        %777 = vmatpush.msra.mxu0 %v714
        %778 = vmatpush.msra.mxu0 %v713
        %779 = vmatpush.msra.mxu0 %v712
        %780 = vmatmul.f32.gmra.mxu0 %v706
        %v781 = vpop.f32.mrf.mxu0
        %v782 = vadd.f32 %v762, %v781
        %783 = vmatmul.f32.gmra.mxu0 %v707
        %v784 = vpop.f32.mrf.mxu0
        %v785 = vadd.f32 %v762, %v784
        %786 = vdwg.mxu0
        %787 = vmatpush.msra.mxu0 %v743
        %788 = vmatpush.msra.mxu0 %v742
        %789 = vmatpush.msra.mxu0 %v741
        %790 = vmatpush.msra.mxu0 %v740
        %791 = vmatpush.msra.mxu0 %v739
        %792 = vmatpush.msra.mxu0 %v738
        %793 = vmatpush.msra.mxu0 %v737
        %794 = vmatpush.msra.mxu0 %v736
        %795 = vmatpush.msra.mxu0 %v735
        %796 = vmatpush.msra.mxu0 %v734
        %797 = vmatpush.msra.mxu0 %v733
        %798 = vmatpush.msra.mxu0 %v732
        %799 = vmatpush.msra.mxu0 %v731
        %800 = vmatpush.msra.mxu0 %v730
        %801 = vmatpush.msra.mxu0 %v729
        %802 = vmatpush.msra.mxu0 %v728
        %803 = vmatmul.f32.gmra.mxu0 %v708
        %v804 = vpop.f32.mrf.mxu0
        %v805 = vadd.f32 %v782, %v804
        %806 = vmatmul.f32.gmra.mxu0 %v709
        %v807 = vpop.f32.mrf.mxu0
        %v808 = vadd.f32 %v785, %v807
        %809 = vdwg.mxu0
        %810 = vmatpush.msra.mxu0 %v759
        %811 = vmatpush.msra.mxu0 %v758
        %812 = vmatpush.msra.mxu0 %v757
        %813 = vmatpush.msra.mxu0 %v756
        %814 = vmatpush.msra.mxu0 %v755
        %815 = vmatpush.msra.mxu0 %v754
        %816 = vmatpush.msra.mxu0 %v753
        %817 = vmatpush.msra.mxu0 %v752
        %818 = vmatpush.msra.mxu0 %v751
        %819 = vmatpush.msra.mxu0 %v750
        %820 = vmatpush.msra.mxu0 %v749
        %821 = vmatpush.msra.mxu0 %v748
        %822 = vmatpush.msra.mxu0 %v747
        %823 = vmatpush.msra.mxu0 %v746
        %824 = vmatpush.msra.mxu0 %v745
        %825 = vmatpush.msra.mxu0 %v744
        %826 = vmatmul.f32.gmra.mxu0 %v710
        %v827 = vpop.f32.mrf.mxu0
        %v828 = vadd.f32 %v805, %v827
        %829 = vmatmul.f32.gmra.mxu0 %v711
        %v830 = vpop.f32.mrf.mxu0
        %v831 = vadd.f32 %v808, %v830
        %832 = vdwg.mxu0
        %833 = vst [vmem:[%s348] sm:$0xff] %v828
        %834 = vst [vmem:[%s348 + $0x8] sm:$0xff] %v831
        %s835 = sand.u32 %s186, 1
        %s836 = scalar_lea.sflag [#allocation5], %s835
        %s837 = sand.u32 %s186, 1
        %s838 = smul.addr %s837, 16
        %s839 = scalar_lea.vmem [#allocation11], %s838
        // Predicated region
        $region65: #{tpu_custom_call.1} parent=47 // pred_check
          %p840 = pneg %p196
        $region66: #{tpu_custom_call.1} parent=47 // pred_check_branch
          %842 = sbr.rel (%p840) target = $region68
        $region67: #{tpu_custom_call.1} parent=47 // pred_region
          %844 = vsyncadd %s836, 0
          %s845 = smul.addr %s26, 2
          %s846 = smul.addr %s845, 8
          %s847 = scalar_lea.hbm %s7, %s846
          %s848 = sshll.u32 %s839, 4
          %s849 = int_to_ptr.vmem [resolvable:$true] %s848
          %s850 = sshll.u32 %s847, 4
          %s851 = int_to_ptr.hbm [resolvable:$true] %s850
          %856 = dma.vmem_to_hbm [thread:$0]  %s849, 256, %s851, %s836, 128, 128, 8
        $region68: #{tpu_custom_call.1} parent=47 // pred_fallthru
          _
      $region48: #{tpu_custom_call.1} parent=5 // pred_fallthru
        _
      %p857 = scmp.le.s32.totalorder 2, %s21
      // Predicated region
      $region69: #{tpu_custom_call.1} parent=5 // pred_check
        %p858 = pneg %p857
      $region70: #{tpu_custom_call.1} parent=5 // pred_check_branch
        %860 = sbr.rel (%p858) target = $region72
      $region71: #{tpu_custom_call.1} parent=5 // pred_region
        %s861 = ssub.s32 %s21, 2
        // Predicated region
        $region73: #{tpu_custom_call.1} parent=71 // pred_check
          %p862 = pneg %p202
        $region74: #{tpu_custom_call.1} parent=71 // pred_check_branch
          %864 = sbr.rel (%p862) target = $region76
        $region75: #{tpu_custom_call.1} parent=71 // pred_region
          %s865 = sand.u32 %s187, 1
          %s866 = scalar_lea.sflag [#allocation5], %s865
          %s867 = sand.u32 %s187, 1
          %s868 = smul.addr %s867, 16
          %s869 = scalar_lea.vmem [#allocation11], %s868
          %871 = dma.done %s866, 256
        $region76: #{tpu_custom_call.1} parent=71 // pred_fallthru
          _
      $region72: #{tpu_custom_call.1} parent=5 // pred_fallthru
        _
    $region6: #{tpu_custom_call.1} parent=1 // loop_footer
      %s25 = sadd.s32 1, %s21
    $region7: #{tpu_custom_call.1} parent=1 // loop_footer_branch
      %20 = sbr.rel target = $region3
    $region8: #{tpu_custom_call.1} parent=1 // loop_exit
      _
    %872 = vsyncpa [#allocation4], 1
    %s873 = scalar_lea.sflag [#allocation4], 1
    %874 = vsyncpa %s873, 1
    %875 = vsyncpa [#allocation7], 1
    %876 = vsyncpa [#allocation10], 1
    %877 = vsyncpa [#allocation5], 1
    %s878 = scalar_lea.sflag [#allocation5], 1
    %879 = vsyncpa %s878, 1

</llo_original>
